<compile_context>
chip_gen: v7x
topology: tpu7x:2x2x1
jax: 0.10.0
libtpu: 0.0.40
codegen_flags: <defaults>
</compile_context>

<pallas_src>
import functools

import jax
import jax.numpy as jnp
import numpy as np
from jax.experimental import pallas as pl
from jax.experimental.pallas import tpu as pltpu


def _resnet_block_kernel(x_ref, w1_ref, b1_ref, w2_ref, b2_ref, out_ref, slab_ref,
                         *, H, W, TB):
    # x_ref  : (TB, C, H*W)  TB images, channels on sublanes, pixels on lanes
    # w1/w2  : (C, 9*C)      Wmat[co, tap*C + ci] = w[kh, kw, ci, co], tap = kh*3 + kw
    # b1/b2  : (C, 1)
    # out_ref: (TB, C, H*W)
    # slab   : (9*C, TB*H*W) VMEM scratch holding the im2col slab
    C = w1_ref.shape[0]
    HW = H * W
    N = TB * HW
    mm_dtype = slab_ref.dtype  # f32, or bf16 if use_bf16_matmul

    # Pack the TB images along the lane axis: (TB, C, HW) -> (C, TB*HW).
    x = jnp.concatenate([x_ref[b] for b in range(TB)], axis=1)  # (C, N) f32

    # Per-image flat-pixel / column indices, tiled across images. No vector mod:
    # pos[g] = g % HW, col[g] = g % W, built from small iotas tiled along lanes.
    pos1 = jax.lax.broadcasted_iota(jnp.int32, (C, HW), 1)                    # (C, HW)
    col1 = jnp.tile(jax.lax.broadcasted_iota(jnp.int32, (C, W), 1), (1, H))   # (C, HW)
    pos = jnp.tile(pos1, (1, TB))                                             # (C, N)
    col = jnp.tile(col1, (1, TB))                                             # (C, N)

    # Hoisted tap metadata: (lane shift, validity mask).  Masks depend only on
    # pos/col, so they are built ONCE and reused by both convs / all TB images.
    taps = []
    for kh in range(3):
        for kw in range(3):
            dh, dw = kh - 1, kw - 1
            shift = dh * W + dw  # source pixel = p + shift (within an image)
            conds = []
            if dh == -1:
                conds.append(pos >= W)              # h - 1 >= 0
            if dh == 1:
                conds.append(pos < (H - 1) * W)     # h + 1 <= H - 1
            if dw == -1:
                conds.append(col >= 1)              # w - 1 >= 0
            if dw == 1:
                conds.append(col < W - 1)           # w + 1 <= W - 1
            valid = functools.reduce(lambda m, c: m & c, conds) if conds else None
            taps.append((shift, valid))

    def im2col_into_slab(a):
        """(C, N) activation -> slab_ref rows [tap*C:(tap+1)*C) = masked lane-rolls."""
        for t, (shift, valid) in enumerate(taps):
            if shift == 0:
                rolled = a
            else:
                # rolled[g] = a[(g + shift) mod N]; any wrap / cross-image lane is
                # exactly a position the boundary mask zeroes out.
                rolled = pltpu.roll(a, shift=(-shift) % N, axis=1)
            if valid is not None:
                rolled = jnp.where(valid, rolled, 0.0)
            slab_ref[t * C:(t + 1) * C, :] = rolled.astype(mm_dtype)

    # conv1 -> ReLU: a single (C, 9C) @ (9C, TB*HW) MXU matmul, f32 accumulate.
    im2col_into_slab(x)
    h = jnp.dot(w1_ref[...], slab_ref[...], preferred_element_type=jnp.float32)
    h = jnp.maximum(h + b1_ref[...], 0.0)

    # conv2 + residual + ReLU (residual read from the already-packed input stream).
    im2col_into_slab(h)
    y = jnp.dot(w2_ref[...], slab_ref[...], preferred_element_type=jnp.float32)
    y = jnp.maximum(y + b2_ref[...] + x, 0.0)

    # Unpack lanes back to (TB, C, HW): per-image lane slices at 128-aligned offsets.
    for b in range(TB):
        out_ref[b] = y[:, b * HW:(b + 1) * HW]


def _pick_tb(B, cap=32):
    """Largest divisor of B that is <= cap (keeps the grid exact, bounds VMEM)."""
    tb = min(B, cap)
    while B % tb:
        tb -= 1
    return tb


@functools.partial(jax.jit, static_argnames=("tb", "use_bf16_matmul"))
def resnet_block(x_nchw, w1, b1, w2, b2, *, tb=None, use_bf16_matmul=False):
    """x_nchw: (B, C, H, W) f32. w: (3, 3, C_in, C_out) (HWIO). b: (C,). Returns NCHW.

    use_bf16_matmul=True casts the im2col slab and packed weights to bf16 (v6e/v7x
    MXU sweet spot); bias/residual/ReLU stay f32.  Off by default so the strict
    1e-5 reference check passes.
    """
    B, C, H, W = x_nchw.shape
    HW = H * W
    TB = _pick_tb(B) if tb is None else tb
    assert B % TB == 0, "TB must divide the batch"
    mm_dtype = jnp.bfloat16 if use_bf16_matmul else jnp.float32

    # Free reshape only (no transpose, no pad): NCHW is already (B, C, H*W).
    x_flat = x_nchw.reshape(B, C, HW).astype(jnp.float32)

    def pack_w(w):  # (3,3,Cin,Cout) -> (Cout, 9*Cin) matching the im2col tap order
        return (jnp.transpose(w.reshape(9, C, C), (2, 0, 1))
                .reshape(C, 9 * C).astype(mm_dtype))

    w1_k = pack_w(w1)
    w2_k = pack_w(w2)
    b1_k = b1.reshape(C, 1).astype(jnp.float32)
    b2_k = b2.reshape(C, 1).astype(jnp.float32)

    kernel = functools.partial(_resnet_block_kernel, H=H, W=W, TB=TB)

    # Advisory cost hint: 2 convs x (2 * C * 9C MACs per pixel) over B*HW pixels.
    flops = 2 * 2 * C * 9 * C * B * HW
    bytes_accessed = 4 * (2 * B * C * HW) + 2 * w1_k.size * w1_k.dtype.itemsize + 2 * 4 * C

    out_flat = pl.pallas_call(
        kernel,
        out_shape=jax.ShapeDtypeStruct((B, C, HW), jnp.float32),
        grid=(B // TB,),
        in_specs=[
            pl.BlockSpec((TB, C, HW), lambda i: (i, 0, 0)),   # x (also the residual)
            pl.BlockSpec((C, 9 * C), lambda i: (0, 0)),       # w1 (resident)
            pl.BlockSpec((C, 1), lambda i: (0, 0)),           # b1
            pl.BlockSpec((C, 9 * C), lambda i: (0, 0)),       # w2 (resident)
            pl.BlockSpec((C, 1), lambda i: (0, 0)),           # b2
        ],
        out_specs=pl.BlockSpec((TB, C, HW), lambda i: (i, 0, 0)),
        scratch_shapes=[pltpu.VMEM((9 * C, TB * HW), mm_dtype)],  # im2col slab
        compiler_params=pltpu.CompilerParams(
            dimension_semantics=("parallel",)),
        cost_estimate=pl.CostEstimate(flops=flops, transcendentals=0,
                                      bytes_accessed=bytes_accessed),
    )(x_flat, w1_k, b1_k, w2_k, b2_k)

    return out_flat.reshape(B, C, H, W)


def _reference(x_nchw, w1, b1, w2, b2):
    """Pure-JAX reference matching PyTorch semantics (NCHW, 'same' 3x3 convs)."""
    def conv(x, w_hwio, b):
        w_oihw = jnp.transpose(w_hwio, (3, 2, 0, 1))  # (3,3,Cin,Cout) -> (Cout,Cin,3,3)
        y = jax.lax.conv_general_dilated(
            x, w_oihw, window_strides=(1, 1), padding=((1, 1), (1, 1)),
            dimension_numbers=("NCHW", "OIHW", "NCHW"))
        return y + b[None, :, None, None]

    h = jax.nn.relu(conv(x_nchw, w1, b1))
    y = conv(h, w2, b2)
    return jax.nn.relu(y + x_nchw)


if __name__ == "__main__":
    B, C, H, W = 2, 8, 16, 16  # n_features = 8

    key = jax.random.PRNGKey(0)
    kx, kw1, kb1, kw2, kb2 = jax.random.split(key, 5)

    x = jax.random.normal(kx, (B, C, H, W), dtype=jnp.float32)
    # Deterministic synthetic parameters (PyTorch shapes: Conv2d(C, C, 3, padding=1)).
    w1 = jax.random.normal(kw1, (3, 3, C, C), dtype=jnp.float32) * 0.1
    b1 = jax.random.normal(kb1, (C,), dtype=jnp.float32) * 0.1
    w2 = jax.random.normal(kw2, (3, 3, C, C), dtype=jnp.float32) * 0.1
    b2 = jax.random.normal(kb2, (C,), dtype=jnp.float32) * 0.1

    out = resnet_block(x, w1, b1, w2, b2)   # B=2 -> TB=2, single grid step
    out = jax.block_until_ready(out)

    ref = jax.block_until_ready(_reference(x, w1, b1, w2, b2))
    assert out.shape == (B, C, H, W)
    np.testing.assert_allclose(np.asarray(out), np.asarray(ref), rtol=1e-5, atol=1e-5)

    print("KERNEL_OK")
</pallas_src>

<mosaic_0001>
module attributes {stable_mosaic.version = 11 : i64} {
  func.func @_resnet_block_kernel(%arg0: i32, %arg1: memref<2x8x256xf32, #tpu.memory_space<vmem>>, %arg2: memref<8x72xf32, #tpu.memory_space<vmem>>, %arg3: memref<8x1xf32, #tpu.memory_space<vmem>>, %arg4: memref<8x72xf32, #tpu.memory_space<vmem>>, %arg5: memref<8x1xf32, #tpu.memory_space<vmem>>, %arg6: memref<2x8x256xf32, #tpu.memory_space<vmem>>, %arg7: memref<72x512xf32, #tpu.memory_space<vmem>>) attributes {dimension_semantics = [#tpu.dimension_semantics<parallel>], iteration_bounds = array<i64: 1>, scalar_prefetch = 0 : i64, scratch_operands = 1 : i64, tpu.core_type = #tpu.core_type<tc>, window_params = [{transform_indices = @transform_0, window_bounds = array<i64: 2, 8, 256>}, {pipeline_mode = #tpu.pipeline_mode<synchronous>, transform_indices = @transform_1, window_bounds = array<i64: 8, 72>}, {pipeline_mode = #tpu.pipeline_mode<synchronous>, transform_indices = @transform_2, window_bounds = array<i64: 8, 1>}, {pipeline_mode = #tpu.pipeline_mode<synchronous>, transform_indices = @transform_3, window_bounds = array<i64: 8, 72>}, {pipeline_mode = #tpu.pipeline_mode<synchronous>, transform_indices = @transform_4, window_bounds = array<i64: 8, 1>}, {transform_indices = @transform_5, window_bounds = array<i64: 2, 8, 256>}]} {
    %c0 = arith.constant 0 : index
    %c0_0 = arith.constant 0 : index
    %c0_1 = arith.constant 0 : index
    %0 = vector.load %arg1[%c0, %c0_0, %c0_1] : memref<2x8x256xf32, #tpu.memory_space<vmem>>, vector<1x8x256xf32>
    %1 = vector.shape_cast %0 : vector<1x8x256xf32> to vector<8x256xf32>
    %c1 = arith.constant 1 : index
    %c0_2 = arith.constant 0 : index
    %c0_3 = arith.constant 0 : index
    %2 = vector.load %arg1[%c1, %c0_2, %c0_3] : memref<2x8x256xf32, #tpu.memory_space<vmem>>, vector<1x8x256xf32>
    %3 = vector.shape_cast %2 : vector<1x8x256xf32> to vector<8x256xf32>
    %4 = tpu.concatenate %1, %3 in 1 : vector<8x256xf32>, vector<8x256xf32> -> vector<8x512xf32>
    %5 = tpu.iota {dimensions = array<i32: 1>} : vector<8x256xi32>
    %6 = tpu.iota {dimensions = array<i32: 1>} : vector<8x16xi32>
    %7 = tpu.concatenate %6, %6, %6, %6, %6, %6, %6, %6, %6, %6, %6, %6, %6, %6, %6, %6 in 1 : vector<8x16xi32>, vector<8x16xi32>, vector<8x16xi32>, vector<8x16xi32>, vector<8x16xi32>, vector<8x16xi32>, vector<8x16xi32>, vector<8x16xi32>, vector<8x16xi32>, vector<8x16xi32>, vector<8x16xi32>, vector<8x16xi32>, vector<8x16xi32>, vector<8x16xi32>, vector<8x16xi32>, vector<8x16xi32> -> vector<8x256xi32>
    %8 = tpu.concatenate %5, %5 in 1 : vector<8x256xi32>, vector<8x256xi32> -> vector<8x512xi32>
    %9 = tpu.concatenate %7, %7 in 1 : vector<8x256xi32>, vector<8x256xi32> -> vector<8x512xi32>
    %c16_i32 = arith.constant 16 : i32
    %10 = vector.broadcast %c16_i32 : i32 to vector<8x512xi32>
    %11 = arith.cmpi sge, %8, %10 : vector<8x512xi32>
    %c1_i32 = arith.constant 1 : i32
    %12 = vector.broadcast %c1_i32 : i32 to vector<8x512xi32>
    %13 = arith.cmpi sge, %9, %12 : vector<8x512xi32>
    %14 = arith.andi %11, %13 : vector<8x512xi1>
    %c16_i32_4 = arith.constant 16 : i32
    %15 = vector.broadcast %c16_i32_4 : i32 to vector<8x512xi32>
    %16 = arith.cmpi sge, %8, %15 : vector<8x512xi32>
    %c16_i32_5 = arith.constant 16 : i32
    %17 = vector.broadcast %c16_i32_5 : i32 to vector<8x512xi32>
    %18 = arith.cmpi sge, %8, %17 : vector<8x512xi32>
    %c15_i32 = arith.constant 15 : i32
    %19 = vector.broadcast %c15_i32 : i32 to vector<8x512xi32>
    %20 = arith.cmpi slt, %9, %19 : vector<8x512xi32>
    %21 = arith.andi %18, %20 : vector<8x512xi1>
    %c1_i32_6 = arith.constant 1 : i32
    %22 = vector.broadcast %c1_i32_6 : i32 to vector<8x512xi32>
    %23 = arith.cmpi sge, %9, %22 : vector<8x512xi32>
    %c15_i32_7 = arith.constant 15 : i32
    %24 = vector.broadcast %c15_i32_7 : i32 to vector<8x512xi32>
    %25 = arith.cmpi slt, %9, %24 : vector<8x512xi32>
    %c240_i32 = arith.constant 240 : i32
    %26 = vector.broadcast %c240_i32 : i32 to vector<8x512xi32>
    %27 = arith.cmpi slt, %8, %26 : vector<8x512xi32>
    %c1_i32_8 = arith.constant 1 : i32
    %28 = vector.broadcast %c1_i32_8 : i32 to vector<8x512xi32>
    %29 = arith.cmpi sge, %9, %28 : vector<8x512xi32>
    %30 = arith.andi %27, %29 : vector<8x512xi1>
    %c240_i32_9 = arith.constant 240 : i32
    %31 = vector.broadcast %c240_i32_9 : i32 to vector<8x512xi32>
    %32 = arith.cmpi slt, %8, %31 : vector<8x512xi32>
    %c240_i32_10 = arith.constant 240 : i32
    %33 = vector.broadcast %c240_i32_10 : i32 to vector<8x512xi32>
    %34 = arith.cmpi slt, %8, %33 : vector<8x512xi32>
    %c15_i32_11 = arith.constant 15 : i32
    %35 = vector.broadcast %c15_i32_11 : i32 to vector<8x512xi32>
    %36 = arith.cmpi slt, %9, %35 : vector<8x512xi32>
    %37 = arith.andi %34, %36 : vector<8x512xi1>
    %c17_i32 = arith.constant 17 : i32
    %38 = tpu.dynamic_rotate %4 by %c17_i32 dim 1 : vector<8x512xf32>, i32 -> vector<8x512xf32>
    %cst = arith.constant 0.000000e+00 : f32
    %39 = vector.broadcast %cst : f32 to vector<8x512xf32>
    %40 = arith.select %14, %38, %39 : vector<8x512xi1>, vector<8x512xf32>
    %c0_12 = arith.constant 0 : index
    %c0_13 = arith.constant 0 : index
    %41 = vector.load %arg7[%c0_12, %c0_13] : memref<72x512xf32, #tpu.memory_space<vmem>>, vector<8x512xf32>
    tpu.vector_store %arg7[%c0_12, %c0_13], %40 {strides = array<i32>} : memref<72x512xf32, #tpu.memory_space<vmem>>, vector<8x512xf32>,
    %c16_i32_14 = arith.constant 16 : i32
    %42 = tpu.dynamic_rotate %4 by %c16_i32_14 dim 1 : vector<8x512xf32>, i32 -> vector<8x512xf32>
    %cst_15 = arith.constant 0.000000e+00 : f32
    %43 = vector.broadcast %cst_15 : f32 to vector<8x512xf32>
    %44 = arith.select %16, %42, %43 : vector<8x512xi1>, vector<8x512xf32>
    %c8 = arith.constant 8 : index
    %c0_16 = arith.constant 0 : index
    %45 = vector.load %arg7[%c8, %c0_16] : memref<72x512xf32, #tpu.memory_space<vmem>>, vector<8x512xf32>
    tpu.vector_store %arg7[%c8, %c0_16], %44 {strides = array<i32>} : memref<72x512xf32, #tpu.memory_space<vmem>>, vector<8x512xf32>,
    %c15_i32_17 = arith.constant 15 : i32
    %46 = tpu.dynamic_rotate %4 by %c15_i32_17 dim 1 : vector<8x512xf32>, i32 -> vector<8x512xf32>
    %cst_18 = arith.constant 0.000000e+00 : f32
    %47 = vector.broadcast %cst_18 : f32 to vector<8x512xf32>
    %48 = arith.select %21, %46, %47 : vector<8x512xi1>, vector<8x512xf32>
    %c16 = arith.constant 16 : index
    %c0_19 = arith.constant 0 : index
    %49 = vector.load %arg7[%c16, %c0_19] : memref<72x512xf32, #tpu.memory_space<vmem>>, vector<8x512xf32>
    tpu.vector_store %arg7[%c16, %c0_19], %48 {strides = array<i32>} : memref<72x512xf32, #tpu.memory_space<vmem>>, vector<8x512xf32>,
    %c1_i32_20 = arith.constant 1 : i32
    %50 = tpu.dynamic_rotate %4 by %c1_i32_20 dim 1 : vector<8x512xf32>, i32 -> vector<8x512xf32>
    %cst_21 = arith.constant 0.000000e+00 : f32
    %51 = vector.broadcast %cst_21 : f32 to vector<8x512xf32>
    %52 = arith.select %23, %50, %51 : vector<8x512xi1>, vector<8x512xf32>
    %c24 = arith.constant 24 : index
    %c0_22 = arith.constant 0 : index
    %53 = vector.load %arg7[%c24, %c0_22] : memref<72x512xf32, #tpu.memory_space<vmem>>, vector<8x512xf32>
    tpu.vector_store %arg7[%c24, %c0_22], %52 {strides = array<i32>} : memref<72x512xf32, #tpu.memory_space<vmem>>, vector<8x512xf32>,
    %c32 = arith.constant 32 : index
    %c0_23 = arith.constant 0 : index
    %54 = vector.load %arg7[%c32, %c0_23] : memref<72x512xf32, #tpu.memory_space<vmem>>, vector<8x512xf32>
    tpu.vector_store %arg7[%c32, %c0_23], %4 {strides = array<i32>} : memref<72x512xf32, #tpu.memory_space<vmem>>, vector<8x512xf32>,
    %c511_i32 = arith.constant 511 : i32
    %55 = tpu.dynamic_rotate %4 by %c511_i32 dim 1 : vector<8x512xf32>, i32 -> vector<8x512xf32>
    %cst_24 = arith.constant 0.000000e+00 : f32
    %56 = vector.broadcast %cst_24 : f32 to vector<8x512xf32>
    %57 = arith.select %25, %55, %56 : vector<8x512xi1>, vector<8x512xf32>
    %c40 = arith.constant 40 : index
    %c0_25 = arith.constant 0 : index
    %58 = vector.load %arg7[%c40, %c0_25] : memref<72x512xf32, #tpu.memory_space<vmem>>, vector<8x512xf32>
    tpu.vector_store %arg7[%c40, %c0_25], %57 {strides = array<i32>} : memref<72x512xf32, #tpu.memory_space<vmem>>, vector<8x512xf32>,
    %c497_i32 = arith.constant 497 : i32
    %59 = tpu.dynamic_rotate %4 by %c497_i32 dim 1 : vector<8x512xf32>, i32 -> vector<8x512xf32>
    %cst_26 = arith.constant 0.000000e+00 : f32
    %60 = vector.broadcast %cst_26 : f32 to vector<8x512xf32>
    %61 = arith.select %30, %59, %60 : vector<8x512xi1>, vector<8x512xf32>
    %c48 = arith.constant 48 : index
    %c0_27 = arith.constant 0 : index
    %62 = vector.load %arg7[%c48, %c0_27] : memref<72x512xf32, #tpu.memory_space<vmem>>, vector<8x512xf32>
    tpu.vector_store %arg7[%c48, %c0_27], %61 {strides = array<i32>} : memref<72x512xf32, #tpu.memory_space<vmem>>, vector<8x512xf32>,
    %c496_i32 = arith.constant 496 : i32
    %63 = tpu.dynamic_rotate %4 by %c496_i32 dim 1 : vector<8x512xf32>, i32 -> vector<8x512xf32>
    %cst_28 = arith.constant 0.000000e+00 : f32
    %64 = vector.broadcast %cst_28 : f32 to vector<8x512xf32>
    %65 = arith.select %32, %63, %64 : vector<8x512xi1>, vector<8x512xf32>
    %c56 = arith.constant 56 : index
    %c0_29 = arith.constant 0 : index
    %66 = vector.load %arg7[%c56, %c0_29] : memref<72x512xf32, #tpu.memory_space<vmem>>, vector<8x512xf32>
    tpu.vector_store %arg7[%c56, %c0_29], %65 {strides = array<i32>} : memref<72x512xf32, #tpu.memory_space<vmem>>, vector<8x512xf32>,
    %c495_i32 = arith.constant 495 : i32
    %67 = tpu.dynamic_rotate %4 by %c495_i32 dim 1 : vector<8x512xf32>, i32 -> vector<8x512xf32>
    %cst_30 = arith.constant 0.000000e+00 : f32
    %68 = vector.broadcast %cst_30 : f32 to vector<8x512xf32>
    %69 = arith.select %37, %67, %68 : vector<8x512xi1>, vector<8x512xf32>
    %c64 = arith.constant 64 : index
    %c0_31 = arith.constant 0 : index
    %70 = vector.load %arg7[%c64, %c0_31] : memref<72x512xf32, #tpu.memory_space<vmem>>, vector<8x512xf32>
    tpu.vector_store %arg7[%c64, %c0_31], %69 {strides = array<i32>} : memref<72x512xf32, #tpu.memory_space<vmem>>, vector<8x512xf32>,
    %c0_32 = arith.constant 0 : index
    %c0_33 = arith.constant 0 : index
    %71 = vector.load %arg2[%c0_32, %c0_33] : memref<8x72xf32, #tpu.memory_space<vmem>>, vector<8x72xf32>
    %c0_34 = arith.constant 0 : index
    %c0_35 = arith.constant 0 : index
    %72 = vector.load %arg7[%c0_34, %c0_35] : memref<72x512xf32, #tpu.memory_space<vmem>>, vector<72x512xf32>
    %cst_36 = arith.constant dense<0.000000e+00> : vector<8x512xf32>
    %73 = tpu.matmul %71, %72, %cst_36 {dimension_numbers = #tpu.dot_dimension_numbers<[1], [0], [0], [1], [0, 0, 1, 1], [], []>} : vector<8x72xf32>, vector<72x512xf32>, vector<8x512xf32> -> vector<8x512xf32>
    %c0_37 = arith.constant 0 : index
    %c0_38 = arith.constant 0 : index
    %74 = vector.load %arg3[%c0_37, %c0_38] : memref<8x1xf32, #tpu.memory_space<vmem>>, vector<8x1xf32>
    %75 = vector.broadcast %74 : vector<8x1xf32> to vector<8x512xf32>
    %76 = arith.addf %73, %75 : vector<8x512xf32>
    %cst_39 = arith.constant 0.000000e+00 : f32
    %77 = vector.broadcast %cst_39 : f32 to vector<8x512xf32>
    %78 = arith.maximumf %76, %77 : vector<8x512xf32>
    %c17_i32_40 = arith.constant 17 : i32
    %79 = tpu.dynamic_rotate %78 by %c17_i32_40 dim 1 : vector<8x512xf32>, i32 -> vector<8x512xf32>
    %cst_41 = arith.constant 0.000000e+00 : f32
    %80 = vector.broadcast %cst_41 : f32 to vector<8x512xf32>
    %81 = arith.select %14, %79, %80 : vector<8x512xi1>, vector<8x512xf32>
    %c0_42 = arith.constant 0 : index
    %c0_43 = arith.constant 0 : index
    %82 = vector.load %arg7[%c0_42, %c0_43] : memref<72x512xf32, #tpu.memory_space<vmem>>, vector<8x512xf32>
    tpu.vector_store %arg7[%c0_42, %c0_43], %81 {strides = array<i32>} : memref<72x512xf32, #tpu.memory_space<vmem>>, vector<8x512xf32>,
    %c16_i32_44 = arith.constant 16 : i32
    %83 = tpu.dynamic_rotate %78 by %c16_i32_44 dim 1 : vector<8x512xf32>, i32 -> vector<8x512xf32>
    %cst_45 = arith.constant 0.000000e+00 : f32
    %84 = vector.broadcast %cst_45 : f32 to vector<8x512xf32>
    %85 = arith.select %16, %83, %84 : vector<8x512xi1>, vector<8x512xf32>
    %c8_46 = arith.constant 8 : index
    %c0_47 = arith.constant 0 : index
    %86 = vector.load %arg7[%c8_46, %c0_47] : memref<72x512xf32, #tpu.memory_space<vmem>>, vector<8x512xf32>
    tpu.vector_store %arg7[%c8_46, %c0_47], %85 {strides = array<i32>} : memref<72x512xf32, #tpu.memory_space<vmem>>, vector<8x512xf32>,
    %c15_i32_48 = arith.constant 15 : i32
    %87 = tpu.dynamic_rotate %78 by %c15_i32_48 dim 1 : vector<8x512xf32>, i32 -> vector<8x512xf32>
    %cst_49 = arith.constant 0.000000e+00 : f32
    %88 = vector.broadcast %cst_49 : f32 to vector<8x512xf32>
    %89 = arith.select %21, %87, %88 : vector<8x512xi1>, vector<8x512xf32>
    %c16_50 = arith.constant 16 : index
    %c0_51 = arith.constant 0 : index
    %90 = vector.load %arg7[%c16_50, %c0_51] : memref<72x512xf32, #tpu.memory_space<vmem>>, vector<8x512xf32>
    tpu.vector_store %arg7[%c16_50, %c0_51], %89 {strides = array<i32>} : memref<72x512xf32, #tpu.memory_space<vmem>>, vector<8x512xf32>,
    %c1_i32_52 = arith.constant 1 : i32
    %91 = tpu.dynamic_rotate %78 by %c1_i32_52 dim 1 : vector<8x512xf32>, i32 -> vector<8x512xf32>
    %cst_53 = arith.constant 0.000000e+00 : f32
    %92 = vector.broadcast %cst_53 : f32 to vector<8x512xf32>
    %93 = arith.select %23, %91, %92 : vector<8x512xi1>, vector<8x512xf32>
    %c24_54 = arith.constant 24 : index
    %c0_55 = arith.constant 0 : index
    %94 = vector.load %arg7[%c24_54, %c0_55] : memref<72x512xf32, #tpu.memory_space<vmem>>, vector<8x512xf32>
    tpu.vector_store %arg7[%c24_54, %c0_55], %93 {strides = array<i32>} : memref<72x512xf32, #tpu.memory_space<vmem>>, vector<8x512xf32>,
    %c32_56 = arith.constant 32 : index
    %c0_57 = arith.constant 0 : index
    %95 = vector.load %arg7[%c32_56, %c0_57] : memref<72x512xf32, #tpu.memory_space<vmem>>, vector<8x512xf32>
    tpu.vector_store %arg7[%c32_56, %c0_57], %78 {strides = array<i32>} : memref<72x512xf32, #tpu.memory_space<vmem>>, vector<8x512xf32>,
    %c511_i32_58 = arith.constant 511 : i32
    %96 = tpu.dynamic_rotate %78 by %c511_i32_58 dim 1 : vector<8x512xf32>, i32 -> vector<8x512xf32>
    %cst_59 = arith.constant 0.000000e+00 : f32
    %97 = vector.broadcast %cst_59 : f32 to vector<8x512xf32>
    %98 = arith.select %25, %96, %97 : vector<8x512xi1>, vector<8x512xf32>
    %c40_60 = arith.constant 40 : index
    %c0_61 = arith.constant 0 : index
    %99 = vector.load %arg7[%c40_60, %c0_61] : memref<72x512xf32, #tpu.memory_space<vmem>>, vector<8x512xf32>
    tpu.vector_store %arg7[%c40_60, %c0_61], %98 {strides = array<i32>} : memref<72x512xf32, #tpu.memory_space<vmem>>, vector<8x512xf32>,
    %c497_i32_62 = arith.constant 497 : i32
    %100 = tpu.dynamic_rotate %78 by %c497_i32_62 dim 1 : vector<8x512xf32>, i32 -> vector<8x512xf32>
    %cst_63 = arith.constant 0.000000e+00 : f32
    %101 = vector.broadcast %cst_63 : f32 to vector<8x512xf32>
    %102 = arith.select %30, %100, %101 : vector<8x512xi1>, vector<8x512xf32>
    %c48_64 = arith.constant 48 : index
    %c0_65 = arith.constant 0 : index
    %103 = vector.load %arg7[%c48_64, %c0_65] : memref<72x512xf32, #tpu.memory_space<vmem>>, vector<8x512xf32>
    tpu.vector_store %arg7[%c48_64, %c0_65], %102 {strides = array<i32>} : memref<72x512xf32, #tpu.memory_space<vmem>>, vector<8x512xf32>,
    %c496_i32_66 = arith.constant 496 : i32
    %104 = tpu.dynamic_rotate %78 by %c496_i32_66 dim 1 : vector<8x512xf32>, i32 -> vector<8x512xf32>
    %cst_67 = arith.constant 0.000000e+00 : f32
    %105 = vector.broadcast %cst_67 : f32 to vector<8x512xf32>
    %106 = arith.select %32, %104, %105 : vector<8x512xi1>, vector<8x512xf32>
    %c56_68 = arith.constant 56 : index
    %c0_69 = arith.constant 0 : index
    %107 = vector.load %arg7[%c56_68, %c0_69] : memref<72x512xf32, #tpu.memory_space<vmem>>, vector<8x512xf32>
    tpu.vector_store %arg7[%c56_68, %c0_69], %106 {strides = array<i32>} : memref<72x512xf32, #tpu.memory_space<vmem>>, vector<8x512xf32>,
    %c495_i32_70 = arith.constant 495 : i32
    %108 = tpu.dynamic_rotate %78 by %c495_i32_70 dim 1 : vector<8x512xf32>, i32 -> vector<8x512xf32>
    %cst_71 = arith.constant 0.000000e+00 : f32
    %109 = vector.broadcast %cst_71 : f32 to vector<8x512xf32>
    %110 = arith.select %37, %108, %109 : vector<8x512xi1>, vector<8x512xf32>
    %c64_72 = arith.constant 64 : index
    %c0_73 = arith.constant 0 : index
    %111 = vector.load %arg7[%c64_72, %c0_73] : memref<72x512xf32, #tpu.memory_space<vmem>>, vector<8x512xf32>
    tpu.vector_store %arg7[%c64_72, %c0_73], %110 {strides = array<i32>} : memref<72x512xf32, #tpu.memory_space<vmem>>, vector<8x512xf32>,
    %c0_74 = arith.constant 0 : index
    %c0_75 = arith.constant 0 : index
    %112 = vector.load %arg4[%c0_74, %c0_75] : memref<8x72xf32, #tpu.memory_space<vmem>>, vector<8x72xf32>
    %c0_76 = arith.constant 0 : index
    %c0_77 = arith.constant 0 : index
    %113 = vector.load %arg7[%c0_76, %c0_77] : memref<72x512xf32, #tpu.memory_space<vmem>>, vector<72x512xf32>
    %cst_78 = arith.constant dense<0.000000e+00> : vector<8x512xf32>
    %114 = tpu.matmul %112, %113, %cst_78 {dimension_numbers = #tpu.dot_dimension_numbers<[1], [0], [0], [1], [0, 0, 1, 1], [], []>} : vector<8x72xf32>, vector<72x512xf32>, vector<8x512xf32> -> vector<8x512xf32>
    %c0_79 = arith.constant 0 : index
    %c0_80 = arith.constant 0 : index
    %115 = vector.load %arg5[%c0_79, %c0_80] : memref<8x1xf32, #tpu.memory_space<vmem>>, vector<8x1xf32>
    %116 = vector.broadcast %115 : vector<8x1xf32> to vector<8x512xf32>
    %117 = arith.addf %114, %116 : vector<8x512xf32>
    %118 = arith.addf %117, %4 : vector<8x512xf32>
    %cst_81 = arith.constant 0.000000e+00 : f32
    %119 = vector.broadcast %cst_81 : f32 to vector<8x512xf32>
    %120 = arith.maximumf %118, %119 : vector<8x512xf32>
    %121 = vector.extract_strided_slice %120 {offsets = [0, 0], sizes = [8, 256], strides = [1, 1]} : vector<8x512xf32> to vector<8x256xf32>
    %c0_82 = arith.constant 0 : index
    %c0_83 = arith.constant 0 : index
    %c0_84 = arith.constant 0 : index
    %122 = vector.load %arg6[%c0_82, %c0_83, %c0_84] : memref<2x8x256xf32, #tpu.memory_space<vmem>>, vector<1x8x256xf32>
    %123 = vector.shape_cast %122 : vector<1x8x256xf32> to vector<8x256xf32>
    %124 = vector.shape_cast %121 : vector<8x256xf32> to vector<1x8x256xf32>
    tpu.vector_store %arg6[%c0_82, %c0_83, %c0_84], %124 {strides = array<i32>} : memref<2x8x256xf32, #tpu.memory_space<vmem>>, vector<1x8x256xf32>,
    %125 = vector.extract_strided_slice %120 {offsets = [0, 256], sizes = [8, 256], strides = [1, 1]} : vector<8x512xf32> to vector<8x256xf32>
    %c1_85 = arith.constant 1 : index
    %c0_86 = arith.constant 0 : index
    %c0_87 = arith.constant 0 : index
    %126 = vector.load %arg6[%c1_85, %c0_86, %c0_87] : memref<2x8x256xf32, #tpu.memory_space<vmem>>, vector<1x8x256xf32>
    %127 = vector.shape_cast %126 : vector<1x8x256xf32> to vector<8x256xf32>
    %128 = vector.shape_cast %125 : vector<8x256xf32> to vector<1x8x256xf32>
    tpu.vector_store %arg6[%c1_85, %c0_86, %c0_87], %128 {strides = array<i32>} : memref<2x8x256xf32, #tpu.memory_space<vmem>>, vector<1x8x256xf32>,
    return
  }
  func.func @transform_0(%arg0: i32) -> (i32, i32, i32) {
    %c0_i32 = arith.constant 0 : i32
    %c0_i32_0 = arith.constant 0 : i32
    %c0_i32_1 = arith.constant 0 : i32
    return %arg0, %c0_i32, %c0_i32_0 : i32, i32, i32
  }
  func.func @transform_1(%arg0: i32) -> (i32, i32) {
    %c0_i32 = arith.constant 0 : i32
    %c0_i32_0 = arith.constant 0 : i32
    %c0_i32_1 = arith.constant 0 : i32
    return %c0_i32, %c0_i32_0 : i32, i32
  }
  func.func @transform_2(%arg0: i32) -> (i32, i32) {
    %c0_i32 = arith.constant 0 : i32
    %c0_i32_0 = arith.constant 0 : i32
    %c0_i32_1 = arith.constant 0 : i32
    return %c0_i32, %c0_i32_0 : i32, i32
  }
  func.func @transform_3(%arg0: i32) -> (i32, i32) {
    %c0_i32 = arith.constant 0 : i32
    %c0_i32_0 = arith.constant 0 : i32
    %c0_i32_1 = arith.constant 0 : i32
    return %c0_i32, %c0_i32_0 : i32, i32
  }
  func.func @transform_4(%arg0: i32) -> (i32, i32) {
    %c0_i32 = arith.constant 0 : i32
    %c0_i32_0 = arith.constant 0 : i32
    %c0_i32_1 = arith.constant 0 : i32
    return %c0_i32, %c0_i32_0 : i32, i32
  }
  func.func @transform_5(%arg0: i32) -> (i32, i32, i32) {
    %c0_i32 = arith.constant 0 : i32
    %c0_i32_0 = arith.constant 0 : i32
    %c0_i32_1 = arith.constant 0 : i32
    return %arg0, %c0_i32, %c0_i32_0 : i32, i32, i32
  }
}

</mosaic_0001>

<llo_original>
// kernel: resnet_block.1
$region0: #{resnet_block.1}
  #allocation0 [shape = 'u32[]', space=smem, size = 0x4, offset = 0x4, fixed_abs, tag = 'smem constant byte address 0x4 - core index']
  #allocation1 [shape = 'u32[144,128]{1,0:T(1,128)}', space=vmem, size = 0x12000, scoped, tag = 'internal scratch']
  #allocation2 [shape = 'f32[72,512]{1,0:T(8,128)}', space=vmem, size = 0x24000, scoped, tag = 'scratch operand']
  %s0 = inlined_call_operand.vmem [shape: f32[2,8,256], index: 0, kind: input, shape index: {}]
  %s1 = inlined_call_operand.vmem [shape: f32[8,72], index: 1, kind: input, shape index: {}]
  %s2 = inlined_call_operand.vmem [shape: f32[8,1], index: 2, kind: input, shape index: {}]
  %s3 = inlined_call_operand.vmem [shape: f32[8,72], index: 3, kind: input, shape index: {}]
  %s4 = inlined_call_operand.vmem [shape: f32[8,1], index: 4, kind: input, shape index: {}]
  %s5 = inlined_call_operand.vmem [shape: f32[2,8,256], index: 5, kind: output, shape index: {}]
  %s6 = sld [smem:[#allocation0]]
  $region30: #{resnet_block.1} parent=0
    _
  %s8 = ssub.s32 1, %s6
  %s9 = scalar_select 0, %s8, %s6
  // Predicated region
  $region2: #{resnet_block.1} parent=0 // pred_check
    _
  $region3: #{resnet_block.1} parent=0 // pred_check_branch
    %11 = sbr.rel (0) target = $region5
  $region4: #{resnet_block.1} parent=0 // pred_region
    _
  $region5: #{resnet_block.1} parent=0 // pred_fallthru
    _
  // Predicated region
  $region6: #{resnet_block.1} parent=0 // pred_check
    _
  $region7: #{resnet_block.1} parent=0 // pred_check_branch
    %13 = sbr.rel (0) target = $region9
  $region8: #{resnet_block.1} parent=0 // pred_region
    _
  $region9: #{resnet_block.1} parent=0 // pred_fallthru
    _
  // Predicated region
  $region10: #{resnet_block.1} parent=0 // pred_check
    _
  $region11: #{resnet_block.1} parent=0 // pred_check_branch
    %15 = sbr.rel (0) target = $region13
  $region12: #{resnet_block.1} parent=0 // pred_region
    _
  $region13: #{resnet_block.1} parent=0 // pred_fallthru
    _
  // Predicated region
  $region14: #{resnet_block.1} parent=0 // pred_check
    _
  $region15: #{resnet_block.1} parent=0 // pred_check_branch
    %17 = sbr.rel (0) target = $region17
  $region16: #{resnet_block.1} parent=0 // pred_region
    _
  $region17: #{resnet_block.1} parent=0 // pred_fallthru
    _
  // Predicated region
  $region18: #{resnet_block.1} parent=0 // pred_check
    _
  $region19: #{resnet_block.1} parent=0 // pred_check_branch
    %19 = sbr.rel (0) target = $region21
  $region20: #{resnet_block.1} parent=0 // pred_region
    _
  $region21: #{resnet_block.1} parent=0 // pred_fallthru
    _
  %v20 = vld [vmem:[%s0] sm:$0xff]
  %v21 = vld [vmem:[%s0 + $0x8] sm:$0xff]
  %s22 = scalar_lea.vmem %s0, 16
  %v23 = vld [vmem:[%s22] sm:$0xff]
  %v24 = vld [vmem:[%s22 + $0x8] sm:$0xff]
  %v25 = vlaneseq
  %v26 = vand.u32 %v25, 127
  %v27 = vadd.s32 %v26, 128
  %28 = vrot.lane.b32.xlu0 %v26, 16
  %v29 = vpop.permute.xlu0 %28
  %30 = vrot.lane.b32.xlu0 %v26, 32
  %v31 = vpop.permute.xlu0 %30
  %32 = vrot.lane.b32.xlu0 %v26, 48
  %v33 = vpop.permute.xlu0 %32
  %34 = vrot.lane.b32.xlu0 %v26, 64
  %v35 = vpop.permute.xlu0 %34
  %36 = vrot.lane.b32.xlu0 %v26, 80
  %v37 = vpop.permute.xlu0 %36
  %38 = vrot.lane.b32.xlu0 %v26, 96
  %v39 = vpop.permute.xlu0 %38
  %40 = vrot.lane.b32.xlu0 %v26, 112
  %v41 = vpop.permute.xlu0 %40
  %vm42 = vcmask 130048
  %v43 = vsel %vm42, %v26, %v29
  %vm44 = vcmask 261120
  %v45 = vsel %vm44, %v43, %v31
  %vm46 = vcmask 392192
  %v47 = vsel %vm46, %v45, %v33
  %vm48 = vcmask 523264
  %v49 = vsel %vm48, %v47, %v35
  %vm50 = vcmask 654336
  %v51 = vsel %vm50, %v49, %v37
  %vm52 = vcmask 785408
  %v53 = vsel %vm52, %v51, %v39
  %vm54 = vcmask 916480
  %v55 = vsel %vm54, %v53, %v41
  %vm56 = vcmp.ge.s32.totalorder %v26, 16
  %vm57 = vcmp.ge.s32.totalorder %v27, 16
  %vm58 = vcmp.ge.s32.totalorder %v55, 1
  %vm59 = vmand %vm56, %vm58
  %vm60 = vmand %vm57, %vm58
  %vm61 = vcmp.lt.s32.totalorder %v55, 15
  %vm62 = vmand %vm56, %vm61
  %vm63 = vmand %vm57, %vm61
  %vm64 = vcmp.lt.s32.totalorder %v26, 240
  %vm65 = vcmp.lt.s32.totalorder %v27, 240
  %vm66 = vmand %vm64, %vm58
  %vm67 = vmand %vm65, %vm58
  %vm68 = vmand %vm64, %vm61
  %vm69 = vmand %vm65, %vm61
  %70 = vrot.lane.b32.xlu0 %v20, 17
  %v71 = vpop.permute.xlu0 %70
  %72 = vrot.lane.b32.xlu0 %v21, 17
  %v73 = vpop.permute.xlu0 %72
  %74 = vrot.lane.b32.xlu0 %v23, 17
  %v75 = vpop.permute.xlu0 %74
  %76 = vrot.lane.b32.xlu0 %v24, 17
  %v77 = vpop.permute.xlu0 %76
  %vm78 = vcmp.lt.s32.totalorder %v26, 17
  %v79 = vsel %vm78, %v75, %v77
  %v80 = vsel %vm78, %v73, %v75
  %v81 = vsel %vm78, %v71, %v73
  %v82 = vsel %vm78, %v77, %v71
  %v83 = vsel %vm59, %v82, 0.0
  %v84 = vsel %vm60, %v81, 0.0
  %v85 = vsel %vm59, %v80, 0.0
  %v86 = vsel %vm60, %v79, 0.0
  %87 = vst [vmem:[#allocation2] sm:$0xff] %v83
  %88 = vst [vmem:[#allocation2 + $0x8] sm:$0xff] %v84
  %89 = vst [vmem:[#allocation2 + $0x10] sm:$0xff] %v85
  %90 = vst [vmem:[#allocation2 + $0x18] sm:$0xff] %v86
  %91 = vrot.lane.b32.xlu0 %v20, 16
  %v92 = vpop.permute.xlu0 %91
  %93 = vrot.lane.b32.xlu0 %v21, 16
  %v94 = vpop.permute.xlu0 %93
  %95 = vrot.lane.b32.xlu0 %v23, 16
  %v96 = vpop.permute.xlu0 %95
  %97 = vrot.lane.b32.xlu0 %v24, 16
  %v98 = vpop.permute.xlu0 %97
  %vm99 = vcmp.lt.s32.totalorder %v26, 16
  %v100 = vsel %vm99, %v96, %v98
  %v101 = vsel %vm99, %v94, %v96
  %v102 = vsel %vm99, %v92, %v94
  %v103 = vsel %vm99, %v98, %v92
  %v104 = vsel %vm56, %v103, 0.0
  %v105 = vsel %vm57, %v102, 0.0
  %v106 = vsel %vm56, %v101, 0.0
  %v107 = vsel %vm57, %v100, 0.0
  %108 = vst [vmem:[#allocation2 + $0x20] sm:$0xff] %v104
  %109 = vst [vmem:[#allocation2 + $0x28] sm:$0xff] %v105
  %110 = vst [vmem:[#allocation2 + $0x30] sm:$0xff] %v106
  %111 = vst [vmem:[#allocation2 + $0x38] sm:$0xff] %v107
  %112 = vrot.lane.b32.xlu0 %v20, 15
  %v113 = vpop.permute.xlu0 %112
  %114 = vrot.lane.b32.xlu0 %v21, 15
  %v115 = vpop.permute.xlu0 %114
  %116 = vrot.lane.b32.xlu0 %v23, 15
  %v117 = vpop.permute.xlu0 %116
  %118 = vrot.lane.b32.xlu0 %v24, 15
  %v119 = vpop.permute.xlu0 %118
  %vm120 = vcmp.lt.s32.totalorder %v26, 15
  %v121 = vsel %vm120, %v117, %v119
  %v122 = vsel %vm120, %v115, %v117
  %v123 = vsel %vm120, %v113, %v115
  %v124 = vsel %vm120, %v119, %v113
  %v125 = vsel %vm62, %v124, 0.0
  %v126 = vsel %vm63, %v123, 0.0
  %v127 = vsel %vm62, %v122, 0.0
  %v128 = vsel %vm63, %v121, 0.0
  %129 = vst [vmem:[#allocation2 + $0x40] sm:$0xff] %v125
  %130 = vst [vmem:[#allocation2 + $0x48] sm:$0xff] %v126
  %131 = vst [vmem:[#allocation2 + $0x50] sm:$0xff] %v127
  %132 = vst [vmem:[#allocation2 + $0x58] sm:$0xff] %v128
  %133 = vrot.lane.b32.xlu0 %v20, 1
  %v134 = vpop.permute.xlu0 %133
  %135 = vrot.lane.b32.xlu0 %v21, 1
  %v136 = vpop.permute.xlu0 %135
  %137 = vrot.lane.b32.xlu0 %v23, 1
  %v138 = vpop.permute.xlu0 %137
  %139 = vrot.lane.b32.xlu0 %v24, 1
  %v140 = vpop.permute.xlu0 %139
  %vm141 = vcmp.lt.s32.totalorder %v26, 1
  %v142 = vsel %vm141, %v138, %v140
  %v143 = vsel %vm141, %v136, %v138
  %v144 = vsel %vm141, %v134, %v136
  %v145 = vsel %vm141, %v140, %v134
  %v146 = vsel %vm58, %v145, 0.0
  %v147 = vsel %vm58, %v144, 0.0
  %v148 = vsel %vm58, %v143, 0.0
  %v149 = vsel %vm58, %v142, 0.0
  %150 = vst [vmem:[#allocation2 + $0x60] sm:$0xff] %v146
  %151 = vst [vmem:[#allocation2 + $0x68] sm:$0xff] %v147
  %152 = vst [vmem:[#allocation2 + $0x70] sm:$0xff] %v148
  %153 = vst [vmem:[#allocation2 + $0x78] sm:$0xff] %v149
  %154 = vst [vmem:[#allocation2 + $0x80] sm:$0xff] %v20
  %155 = vst [vmem:[#allocation2 + $0x88] sm:$0xff] %v21
  %156 = vst [vmem:[#allocation2 + $0x90] sm:$0xff] %v23
  %157 = vst [vmem:[#allocation2 + $0x98] sm:$0xff] %v24
  %158 = vrot.lane.b32.xlu0 %v20, 127
  %v159 = vpop.permute.xlu0 %158
  %160 = vrot.lane.b32.xlu0 %v21, 127
  %v161 = vpop.permute.xlu0 %160
  %162 = vrot.lane.b32.xlu0 %v23, 127
  %v163 = vpop.permute.xlu0 %162
  %164 = vrot.lane.b32.xlu0 %v24, 127
  %v165 = vpop.permute.xlu0 %164
  %vm166 = vcmp.lt.s32.totalorder %v26, 127
  %v167 = vsel %vm166, %v163, %v165
  %v168 = vsel %vm166, %v161, %v163
  %v169 = vsel %vm166, %v159, %v161
  %v170 = vsel %vm166, %v165, %v159
  %v171 = vsel %vm61, %v169, 0.0
  %v172 = vsel %vm61, %v168, 0.0
  %v173 = vsel %vm61, %v167, 0.0
  %v174 = vsel %vm61, %v170, 0.0
  %175 = vst [vmem:[#allocation2 + $0xa0] sm:$0xff] %v171
  %176 = vst [vmem:[#allocation2 + $0xa8] sm:$0xff] %v172
  %177 = vst [vmem:[#allocation2 + $0xb0] sm:$0xff] %v173
  %178 = vst [vmem:[#allocation2 + $0xb8] sm:$0xff] %v174
  %179 = vrot.lane.b32.xlu0 %v20, 113
  %v180 = vpop.permute.xlu0 %179
  %181 = vrot.lane.b32.xlu0 %v21, 113
  %v182 = vpop.permute.xlu0 %181
  %183 = vrot.lane.b32.xlu0 %v23, 113
  %v184 = vpop.permute.xlu0 %183
  %185 = vrot.lane.b32.xlu0 %v24, 113
  %v186 = vpop.permute.xlu0 %185
  %vm187 = vcmp.lt.s32.totalorder %v26, 113
  %v188 = vsel %vm187, %v184, %v186
  %v189 = vsel %vm187, %v182, %v184
  %v190 = vsel %vm187, %v180, %v182
  %v191 = vsel %vm187, %v186, %v180
  %v192 = vsel %vm66, %v190, 0.0
  %v193 = vsel %vm67, %v189, 0.0
  %v194 = vsel %vm66, %v188, 0.0
  %v195 = vsel %vm67, %v191, 0.0
  %196 = vst [vmem:[#allocation2 + $0xc0] sm:$0xff] %v192
  %197 = vst [vmem:[#allocation2 + $0xc8] sm:$0xff] %v193
  %198 = vst [vmem:[#allocation2 + $0xd0] sm:$0xff] %v194
  %199 = vst [vmem:[#allocation2 + $0xd8] sm:$0xff] %v195
  %200 = vrot.lane.b32.xlu0 %v20, 112
  %v201 = vpop.permute.xlu0 %200
  %202 = vrot.lane.b32.xlu0 %v21, 112
  %v203 = vpop.permute.xlu0 %202
  %204 = vrot.lane.b32.xlu0 %v23, 112
  %v205 = vpop.permute.xlu0 %204
  %206 = vrot.lane.b32.xlu0 %v24, 112
  %v207 = vpop.permute.xlu0 %206
  %vm208 = vcmp.lt.s32.totalorder %v26, 112
  %v209 = vsel %vm208, %v205, %v207
  %v210 = vsel %vm208, %v203, %v205
  %v211 = vsel %vm208, %v201, %v203
  %v212 = vsel %vm208, %v207, %v201
  %v213 = vsel %vm64, %v211, 0.0
  %v214 = vsel %vm65, %v210, 0.0
  %v215 = vsel %vm64, %v209, 0.0
  %v216 = vsel %vm65, %v212, 0.0
  %217 = vst [vmem:[#allocation2 + $0xe0] sm:$0xff] %v213
  %218 = vst [vmem:[#allocation2 + $0xe8] sm:$0xff] %v214
  %219 = vst [vmem:[#allocation2 + $0xf0] sm:$0xff] %v215
  %220 = vst [vmem:[#allocation2 + $0xf8] sm:$0xff] %v216
  %221 = vrot.lane.b32.xlu0 %v20, 111
  %v222 = vpop.permute.xlu0 %221
  %223 = vrot.lane.b32.xlu0 %v21, 111
  %v224 = vpop.permute.xlu0 %223
  %225 = vrot.lane.b32.xlu0 %v23, 111
  %v226 = vpop.permute.xlu0 %225
  %227 = vrot.lane.b32.xlu0 %v24, 111
  %v228 = vpop.permute.xlu0 %227
  %vm229 = vcmp.lt.s32.totalorder %v26, 111
  %v230 = vsel %vm229, %v226, %v228
  %v231 = vsel %vm229, %v224, %v226
  %v232 = vsel %vm229, %v222, %v224
  %v233 = vsel %vm229, %v228, %v222
  %v234 = vsel %vm68, %v232, 0.0
  %v235 = vsel %vm69, %v231, 0.0
  %v236 = vsel %vm68, %v230, 0.0
  %v237 = vsel %vm69, %v233, 0.0
  %238 = vst [vmem:[#allocation2 + $0x100] sm:$0xff] %v234
  %239 = vst [vmem:[#allocation2 + $0x108] sm:$0xff] %v235
  %240 = vst [vmem:[#allocation2 + $0x110] sm:$0xff] %v236
  %241 = vst [vmem:[#allocation2 + $0x118] sm:$0xff] %v237
  %v242 = vld [vmem:[%s1] sm:$0xff]
  %v243 = vld [vmem:[#allocation2] sm:$0xff]
  %v244 = vld [vmem:[#allocation2 + $0x8] sm:$0xff]
  %v245 = vld [vmem:[#allocation2 + $0x10] sm:$0xff]
  %v246 = vld [vmem:[#allocation2 + $0x18] sm:$0xff]
  %v247 = vld [vmem:[#allocation2 + $0x20] sm:$0xff]
  %v248 = vld [vmem:[#allocation2 + $0x28] sm:$0xff]
  %v249 = vld [vmem:[#allocation2 + $0x30] sm:$0xff]
  %v250 = vld [vmem:[#allocation2 + $0x38] sm:$0xff]
  %v251 = vld [vmem:[#allocation2 + $0x40] sm:$0xff]
  %v252 = vld [vmem:[#allocation2 + $0x48] sm:$0xff]
  %v253 = vld [vmem:[#allocation2 + $0x50] sm:$0xff]
  %v254 = vld [vmem:[#allocation2 + $0x58] sm:$0xff]
  %v255 = vld [vmem:[#allocation2 + $0x60] sm:$0xff]
  %v256 = vld [vmem:[#allocation2 + $0x68] sm:$0xff]
  %v257 = vld [vmem:[#allocation2 + $0x70] sm:$0xff]
  %v258 = vld [vmem:[#allocation2 + $0x78] sm:$0xff]
  %v259 = vld [vmem:[#allocation2 + $0x80] sm:$0xff]
  %v260 = vld [vmem:[#allocation2 + $0x88] sm:$0xff]
  %v261 = vld [vmem:[#allocation2 + $0x90] sm:$0xff]
  %v262 = vld [vmem:[#allocation2 + $0x98] sm:$0xff]
  %v263 = vld [vmem:[#allocation2 + $0xa0] sm:$0xff]
  %v264 = vld [vmem:[#allocation2 + $0xa8] sm:$0xff]
  %v265 = vld [vmem:[#allocation2 + $0xb0] sm:$0xff]
  %v266 = vld [vmem:[#allocation2 + $0xb8] sm:$0xff]
  %v267 = vld [vmem:[#allocation2 + $0xc0] sm:$0xff]
  %v268 = vld [vmem:[#allocation2 + $0xc8] sm:$0xff]
  %v269 = vld [vmem:[#allocation2 + $0xd0] sm:$0xff]
  %v270 = vld [vmem:[#allocation2 + $0xd8] sm:$0xff]
  %v271 = vld [vmem:[#allocation2 + $0xe0] sm:$0xff]
  %v272 = vld [vmem:[#allocation2 + $0xe8] sm:$0xff]
  %v273 = vld [vmem:[#allocation2 + $0xf0] sm:$0xff]
  %v274 = vld [vmem:[#allocation2 + $0xf8] sm:$0xff]
  %v275 = vld [vmem:[#allocation2 + $0x100] sm:$0xff]
  %v276 = vld [vmem:[#allocation2 + $0x108] sm:$0xff]
  %v277 = vld [vmem:[#allocation2 + $0x110] sm:$0xff]
  %v278 = vld [vmem:[#allocation2 + $0x118] sm:$0xff]
  %v279 = vld [vmem:[%s2] sm:$0xff]
  %281 = vset.pattern.permute.xlu0 0
  %282 = vperm.xlu0 %281, %v279
  %v283 = vpop.permute.xlu0 %282
  %vm285 = vcmask 588800
  %v287 = vsel %vm285, %v242, 0
  %289 = vmatprep.subr.mxu0 %v244
  %290 = vmatpush1.msra.mxu0 %v243
  %291 = vmatprep.subr.mxu0 %v248
  %292 = vmatpush1.msra.mxu0 %v247
  %293 = vmatprep.subr.mxu0 %v252
  %294 = vmatpush1.msra.mxu0 %v251
  %295 = vmatprep.subr.mxu0 %v256
  %296 = vmatpush1.msra.mxu0 %v255
  %297 = vmatprep.subr.mxu0 %v260
  %298 = vmatpush1.msra.mxu0 %v259
  %299 = vmatprep.subr.mxu0 %v264
  %300 = vmatpush1.msra.mxu0 %v263
  %301 = vmatprep.subr.mxu0 %v268
  %302 = vmatpush1.msra.mxu0 %v267
  %303 = vmatprep.subr.mxu0 %v272
  %304 = vmatpush1.msra.mxu0 %v271
  %305 = vmatprep.subr.mxu0 %v276
  %306 = vmatpush1.msra.mxu0 %v275
  %307 = vmatprep.subr.mxu0 0.0
  %308 = vmatpush1.msra.mxu0 0.0
  %309 = vmatprep.subr.mxu0 0.0
  %310 = vmatpush1.msra.mxu0 0.0
  %311 = vmatprep.subr.mxu0 0.0
  %312 = vmatpush1.msra.mxu0 0.0
  %313 = vmatprep.subr.mxu0 0.0
  %314 = vmatpush1.msra.mxu0 0.0
  %315 = vmatprep.subr.mxu0 0.0
  %316 = vmatpush1.msra.mxu0 0.0
  %317 = vmatprep.subr.mxu0 0.0
  %318 = vmatpush1.msra.mxu0 0.0
  %319 = vmatprep.subr.mxu0 0.0
  %320 = vmatpush1.msra.mxu0 0.0
  %321 = vmatprep.subr.mxu0 0.0
  %322 = vmatpush1.msra.mxu0 0.0
  %323 = vmatprep.subr.mxu0 0.0
  %324 = vmatpush1.msra.mxu0 0.0
  %325 = vmatprep.subr.mxu0 0.0
  %326 = vmatpush1.msra.mxu0 0.0
  %327 = vmatprep.subr.mxu0 0.0
  %328 = vmatpush1.msra.mxu0 0.0
  %329 = vmatprep.subr.mxu0 0.0
  %330 = vmatpush1.msra.mxu0 0.0
  %331 = vmatprep.subr.mxu0 0.0
  %332 = vmatpush1.msra.mxu0 0.0
  %333 = vmatprep.subr.mxu0 0.0
  %334 = vmatpush1.msra.mxu0 0.0
  %335 = vmatprep.subr.mxu0 0.0
  %336 = vmatpush1.msra.mxu0 0.0
  %337 = vmatprep.subr.mxu0 0.0
  %338 = vmatpush1.msra.mxu0 0.0
  %339 = vmatprep.subr.mxu0 0.0
  %340 = vmatpush1.msra.mxu0 0.0
  %341 = vmatprep.subr.mxu0 0.0
  %342 = vmatpush1.msra.mxu0 0.0
  %343 = vmatprep.subr.mxu0 0.0
  %344 = vmatpush1.msra.mxu0 0.0
  %345 = vmatprep.subr.mxu0 0.0
  %346 = vmatpush1.msra.mxu0 0.0
  %347 = vmatprep.subr.mxu0 0.0
  %348 = vmatpush1.msra.mxu0 0.0
  %349 = vmatprep.subr.mxu0 0.0
  %350 = vmatpush1.msra.mxu0 0.0
  %351 = vmatprep.subr.mxu0 0.0
  %352 = vmatpush1.msra.mxu0 0.0
  %353 = vmatprep.mubr.f32.mxu0 0.0
  %354 = vmatmul.mubr.f32.gmra.mrb[0].mxu0 %v287
  %v355 = vpop.f32.mrb[0].mxu0
  %v356 = vadd.f32 %v283, %v355
  %v357 = vpop.f32.mrb[0].mxu0
  %v358 = vadd.f32 %v283, %v357
  %359 = vdwg.mxu0
  %360 = vmatprep.subr.mxu0 %v246
  %361 = vmatpush1.msra.mxu0 %v245
  %362 = vmatprep.subr.mxu0 %v250
  %363 = vmatpush1.msra.mxu0 %v249
  %364 = vmatprep.subr.mxu0 %v254
  %365 = vmatpush1.msra.mxu0 %v253
  %366 = vmatprep.subr.mxu0 %v258
  %367 = vmatpush1.msra.mxu0 %v257
  %368 = vmatprep.subr.mxu0 %v262
  %369 = vmatpush1.msra.mxu0 %v261
  %370 = vmatprep.subr.mxu0 %v266
  %371 = vmatpush1.msra.mxu0 %v265
  %372 = vmatprep.subr.mxu0 %v270
  %373 = vmatpush1.msra.mxu0 %v269
  %374 = vmatprep.subr.mxu0 %v274
  %375 = vmatpush1.msra.mxu0 %v273
  %376 = vmatprep.subr.mxu0 %v278
  %377 = vmatpush1.msra.mxu0 %v277
  %378 = vmatprep.subr.mxu0 0.0
  %379 = vmatpush1.msra.mxu0 0.0
  %380 = vmatprep.subr.mxu0 0.0
  %381 = vmatpush1.msra.mxu0 0.0
  %382 = vmatprep.subr.mxu0 0.0
  %383 = vmatpush1.msra.mxu0 0.0
  %384 = vmatprep.subr.mxu0 0.0
  %385 = vmatpush1.msra.mxu0 0.0
  %386 = vmatprep.subr.mxu0 0.0
  %387 = vmatpush1.msra.mxu0 0.0
  %388 = vmatprep.subr.mxu0 0.0
  %389 = vmatpush1.msra.mxu0 0.0
  %390 = vmatprep.subr.mxu0 0.0
  %391 = vmatpush1.msra.mxu0 0.0
  %392 = vmatprep.subr.mxu0 0.0
  %393 = vmatpush1.msra.mxu0 0.0
  %394 = vmatprep.subr.mxu0 0.0
  %395 = vmatpush1.msra.mxu0 0.0
  %396 = vmatprep.subr.mxu0 0.0
  %397 = vmatpush1.msra.mxu0 0.0
  %398 = vmatprep.subr.mxu0 0.0
  %399 = vmatpush1.msra.mxu0 0.0
  %400 = vmatprep.subr.mxu0 0.0
  %401 = vmatpush1.msra.mxu0 0.0
  %402 = vmatprep.subr.mxu0 0.0
  %403 = vmatpush1.msra.mxu0 0.0
  %404 = vmatprep.subr.mxu0 0.0
  %405 = vmatpush1.msra.mxu0 0.0
  %406 = vmatprep.subr.mxu0 0.0
  %407 = vmatpush1.msra.mxu0 0.0
  %408 = vmatprep.subr.mxu0 0.0
  %409 = vmatpush1.msra.mxu0 0.0
  %410 = vmatprep.subr.mxu0 0.0
  %411 = vmatpush1.msra.mxu0 0.0
  %412 = vmatprep.subr.mxu0 0.0
  %413 = vmatpush1.msra.mxu0 0.0
  %414 = vmatprep.subr.mxu0 0.0
  %415 = vmatpush1.msra.mxu0 0.0
  %416 = vmatprep.subr.mxu0 0.0
  %417 = vmatpush1.msra.mxu0 0.0
  %418 = vmatprep.subr.mxu0 0.0
  %419 = vmatpush1.msra.mxu0 0.0
  %420 = vmatprep.subr.mxu0 0.0
  %421 = vmatpush1.msra.mxu0 0.0
  %422 = vmatprep.subr.mxu0 0.0
  %423 = vmatpush1.msra.mxu0 0.0
  %424 = vmatprep.mubr.f32.mxu0 0.0
  %425 = vmatmul.mubr.f32.gmra.mrb[0].mxu0 %v287
  %v426 = vpop.f32.mrb[0].mxu0
  %v427 = vadd.f32 %v283, %v426
  %v428 = vpop.f32.mrb[0].mxu0
  %v429 = vadd.f32 %v283, %v428
  %430 = vdwg.mxu0
  %v431 = vmax.f32 %v356, 0.0
  %v432 = vmax.f32 %v358, 0.0
  %v433 = vmax.f32 %v427, 0.0
  %v434 = vmax.f32 %v429, 0.0
  %435 = vrot.lane.b32.xlu0 %v431, 17
  %v436 = vpop.permute.xlu0 %435
  %437 = vrot.lane.b32.xlu0 %v432, 17
  %v438 = vpop.permute.xlu0 %437
  %439 = vrot.lane.b32.xlu0 %v433, 17
  %v440 = vpop.permute.xlu0 %439
  %441 = vrot.lane.b32.xlu0 %v434, 17
  %v442 = vpop.permute.xlu0 %441
  %v443 = vsel %vm78, %v440, %v442
  %v444 = vsel %vm78, %v438, %v440
  %v445 = vsel %vm78, %v436, %v438
  %v446 = vsel %vm78, %v442, %v436
  %v447 = vsel %vm59, %v446, 0.0
  %v448 = vsel %vm60, %v445, 0.0
  %v449 = vsel %vm59, %v444, 0.0
  %v450 = vsel %vm60, %v443, 0.0
  %451 = vst [vmem:[#allocation2] sm:$0xff] %v447
  %452 = vst [vmem:[#allocation2 + $0x8] sm:$0xff] %v448
  %453 = vst [vmem:[#allocation2 + $0x10] sm:$0xff] %v449
  %454 = vst [vmem:[#allocation2 + $0x18] sm:$0xff] %v450
  %455 = vrot.lane.b32.xlu0 %v431, 16
  %v456 = vpop.permute.xlu0 %455
  %457 = vrot.lane.b32.xlu0 %v432, 16
  %v458 = vpop.permute.xlu0 %457
  %459 = vrot.lane.b32.xlu0 %v433, 16
  %v460 = vpop.permute.xlu0 %459
  %461 = vrot.lane.b32.xlu0 %v434, 16
  %v462 = vpop.permute.xlu0 %461
  %v463 = vsel %vm99, %v460, %v462
  %v464 = vsel %vm99, %v458, %v460
  %v465 = vsel %vm99, %v456, %v458
  %v466 = vsel %vm99, %v462, %v456
  %v467 = vsel %vm56, %v466, 0.0
  %v468 = vsel %vm57, %v465, 0.0
  %v469 = vsel %vm56, %v464, 0.0
  %v470 = vsel %vm57, %v463, 0.0
  %471 = vst [vmem:[#allocation2 + $0x20] sm:$0xff] %v467
  %472 = vst [vmem:[#allocation2 + $0x28] sm:$0xff] %v468
  %473 = vst [vmem:[#allocation2 + $0x30] sm:$0xff] %v469
  %474 = vst [vmem:[#allocation2 + $0x38] sm:$0xff] %v470
  %475 = vrot.lane.b32.xlu0 %v431, 15
  %v476 = vpop.permute.xlu0 %475
  %477 = vrot.lane.b32.xlu0 %v432, 15
  %v478 = vpop.permute.xlu0 %477
  %479 = vrot.lane.b32.xlu0 %v433, 15
  %v480 = vpop.permute.xlu0 %479
  %481 = vrot.lane.b32.xlu0 %v434, 15
  %v482 = vpop.permute.xlu0 %481
  %v483 = vsel %vm120, %v480, %v482
  %v484 = vsel %vm120, %v478, %v480
  %v485 = vsel %vm120, %v476, %v478
  %v486 = vsel %vm120, %v482, %v476
  %v487 = vsel %vm62, %v486, 0.0
  %v488 = vsel %vm63, %v485, 0.0
  %v489 = vsel %vm62, %v484, 0.0
  %v490 = vsel %vm63, %v483, 0.0
  %491 = vst [vmem:[#allocation2 + $0x40] sm:$0xff] %v487
  %492 = vst [vmem:[#allocation2 + $0x48] sm:$0xff] %v488
  %493 = vst [vmem:[#allocation2 + $0x50] sm:$0xff] %v489
  %494 = vst [vmem:[#allocation2 + $0x58] sm:$0xff] %v490
  %495 = vrot.lane.b32.xlu0 %v431, 1
  %v496 = vpop.permute.xlu0 %495
  %497 = vrot.lane.b32.xlu0 %v432, 1
  %v498 = vpop.permute.xlu0 %497
  %499 = vrot.lane.b32.xlu0 %v433, 1
  %v500 = vpop.permute.xlu0 %499
  %501 = vrot.lane.b32.xlu0 %v434, 1
  %v502 = vpop.permute.xlu0 %501
  %v503 = vsel %vm141, %v500, %v502
  %v504 = vsel %vm141, %v498, %v500
  %v505 = vsel %vm141, %v496, %v498
  %v506 = vsel %vm141, %v502, %v496
  %v507 = vsel %vm58, %v506, 0.0
  %v508 = vsel %vm58, %v505, 0.0
  %v509 = vsel %vm58, %v504, 0.0
  %v510 = vsel %vm58, %v503, 0.0
  %511 = vst [vmem:[#allocation2 + $0x60] sm:$0xff] %v507
  %512 = vst [vmem:[#allocation2 + $0x68] sm:$0xff] %v508
  %513 = vst [vmem:[#allocation2 + $0x70] sm:$0xff] %v509
  %514 = vst [vmem:[#allocation2 + $0x78] sm:$0xff] %v510
  %515 = vst [vmem:[#allocation2 + $0x80] sm:$0xff] %v431
  %516 = vst [vmem:[#allocation2 + $0x88] sm:$0xff] %v432
  %517 = vst [vmem:[#allocation2 + $0x90] sm:$0xff] %v433
  %518 = vst [vmem:[#allocation2 + $0x98] sm:$0xff] %v434
  %519 = vrot.lane.b32.xlu0 %v431, 127
  %v520 = vpop.permute.xlu0 %519
  %521 = vrot.lane.b32.xlu0 %v432, 127
  %v522 = vpop.permute.xlu0 %521
  %523 = vrot.lane.b32.xlu0 %v433, 127
  %v524 = vpop.permute.xlu0 %523
  %525 = vrot.lane.b32.xlu0 %v434, 127
  %v526 = vpop.permute.xlu0 %525
  %v527 = vsel %vm166, %v524, %v526
  %v528 = vsel %vm166, %v522, %v524
  %v529 = vsel %vm166, %v520, %v522
  %v530 = vsel %vm166, %v526, %v520
  %v531 = vsel %vm61, %v529, 0.0
  %v532 = vsel %vm61, %v528, 0.0
  %v533 = vsel %vm61, %v527, 0.0
  %v534 = vsel %vm61, %v530, 0.0
  %535 = vst [vmem:[#allocation2 + $0xa0] sm:$0xff] %v531
  %536 = vst [vmem:[#allocation2 + $0xa8] sm:$0xff] %v532
  %537 = vst [vmem:[#allocation2 + $0xb0] sm:$0xff] %v533
  %538 = vst [vmem:[#allocation2 + $0xb8] sm:$0xff] %v534
  %539 = vrot.lane.b32.xlu0 %v431, 113
  %v540 = vpop.permute.xlu0 %539
  %541 = vrot.lane.b32.xlu0 %v432, 113
  %v542 = vpop.permute.xlu0 %541
  %543 = vrot.lane.b32.xlu0 %v433, 113
  %v544 = vpop.permute.xlu0 %543
  %545 = vrot.lane.b32.xlu0 %v434, 113
  %v546 = vpop.permute.xlu0 %545
  %v547 = vsel %vm187, %v544, %v546
  %v548 = vsel %vm187, %v542, %v544
  %v549 = vsel %vm187, %v540, %v542
  %v550 = vsel %vm187, %v546, %v540
  %v551 = vsel %vm66, %v549, 0.0
  %v552 = vsel %vm67, %v548, 0.0
  %v553 = vsel %vm66, %v547, 0.0
  %v554 = vsel %vm67, %v550, 0.0
  %555 = vst [vmem:[#allocation2 + $0xc0] sm:$0xff] %v551
  %556 = vst [vmem:[#allocation2 + $0xc8] sm:$0xff] %v552
  %557 = vst [vmem:[#allocation2 + $0xd0] sm:$0xff] %v553
  %558 = vst [vmem:[#allocation2 + $0xd8] sm:$0xff] %v554
  %559 = vrot.lane.b32.xlu0 %v431, 112
  %v560 = vpop.permute.xlu0 %559
  %561 = vrot.lane.b32.xlu0 %v432, 112
  %v562 = vpop.permute.xlu0 %561
  %563 = vrot.lane.b32.xlu0 %v433, 112
  %v564 = vpop.permute.xlu0 %563
  %565 = vrot.lane.b32.xlu0 %v434, 112
  %v566 = vpop.permute.xlu0 %565
  %v567 = vsel %vm208, %v564, %v566
  %v568 = vsel %vm208, %v562, %v564
  %v569 = vsel %vm208, %v560, %v562
  %v570 = vsel %vm208, %v566, %v560
  %v571 = vsel %vm64, %v569, 0.0
  %v572 = vsel %vm65, %v568, 0.0
  %v573 = vsel %vm64, %v567, 0.0
  %v574 = vsel %vm65, %v570, 0.0
  %575 = vst [vmem:[#allocation2 + $0xe0] sm:$0xff] %v571
  %576 = vst [vmem:[#allocation2 + $0xe8] sm:$0xff] %v572
  %577 = vst [vmem:[#allocation2 + $0xf0] sm:$0xff] %v573
  %578 = vst [vmem:[#allocation2 + $0xf8] sm:$0xff] %v574
  %579 = vrot.lane.b32.xlu0 %v431, 111
  %v580 = vpop.permute.xlu0 %579
  %581 = vrot.lane.b32.xlu0 %v432, 111
  %v582 = vpop.permute.xlu0 %581
  %583 = vrot.lane.b32.xlu0 %v433, 111
  %v584 = vpop.permute.xlu0 %583
  %585 = vrot.lane.b32.xlu0 %v434, 111
  %v586 = vpop.permute.xlu0 %585
  %v587 = vsel %vm229, %v584, %v586
  %v588 = vsel %vm229, %v582, %v584
  %v589 = vsel %vm229, %v580, %v582
  %v590 = vsel %vm229, %v586, %v580
  %v591 = vsel %vm68, %v589, 0.0
  %v592 = vsel %vm69, %v588, 0.0
  %v593 = vsel %vm68, %v587, 0.0
  %v594 = vsel %vm69, %v590, 0.0
  %595 = vst [vmem:[#allocation2 + $0x100] sm:$0xff] %v591
  %596 = vst [vmem:[#allocation2 + $0x108] sm:$0xff] %v592
  %597 = vst [vmem:[#allocation2 + $0x110] sm:$0xff] %v593
  %598 = vst [vmem:[#allocation2 + $0x118] sm:$0xff] %v594
  %v599 = vld [vmem:[%s3] sm:$0xff]
  %v600 = vld [vmem:[#allocation2] sm:$0xff]
  %v601 = vld [vmem:[#allocation2 + $0x8] sm:$0xff]
  %v602 = vld [vmem:[#allocation2 + $0x10] sm:$0xff]
  %v603 = vld [vmem:[#allocation2 + $0x18] sm:$0xff]
  %v604 = vld [vmem:[#allocation2 + $0x20] sm:$0xff]
  %v605 = vld [vmem:[#allocation2 + $0x28] sm:$0xff]
  %v606 = vld [vmem:[#allocation2 + $0x30] sm:$0xff]
  %v607 = vld [vmem:[#allocation2 + $0x38] sm:$0xff]
  %v608 = vld [vmem:[#allocation2 + $0x40] sm:$0xff]
  %v609 = vld [vmem:[#allocation2 + $0x48] sm:$0xff]
  %v610 = vld [vmem:[#allocation2 + $0x50] sm:$0xff]
  %v611 = vld [vmem:[#allocation2 + $0x58] sm:$0xff]
  %v612 = vld [vmem:[#allocation2 + $0x60] sm:$0xff]
  %v613 = vld [vmem:[#allocation2 + $0x68] sm:$0xff]
  %v614 = vld [vmem:[#allocation2 + $0x70] sm:$0xff]
  %v615 = vld [vmem:[#allocation2 + $0x78] sm:$0xff]
  %v616 = vld [vmem:[#allocation2 + $0x80] sm:$0xff]
  %v617 = vld [vmem:[#allocation2 + $0x88] sm:$0xff]
  %v618 = vld [vmem:[#allocation2 + $0x90] sm:$0xff]
  %v619 = vld [vmem:[#allocation2 + $0x98] sm:$0xff]
  %v620 = vld [vmem:[#allocation2 + $0xa0] sm:$0xff]
  %v621 = vld [vmem:[#allocation2 + $0xa8] sm:$0xff]
  %v622 = vld [vmem:[#allocation2 + $0xb0] sm:$0xff]
  %v623 = vld [vmem:[#allocation2 + $0xb8] sm:$0xff]
  %v624 = vld [vmem:[#allocation2 + $0xc0] sm:$0xff]
  %v625 = vld [vmem:[#allocation2 + $0xc8] sm:$0xff]
  %v626 = vld [vmem:[#allocation2 + $0xd0] sm:$0xff]
  %v627 = vld [vmem:[#allocation2 + $0xd8] sm:$0xff]
  %v628 = vld [vmem:[#allocation2 + $0xe0] sm:$0xff]
  %v629 = vld [vmem:[#allocation2 + $0xe8] sm:$0xff]
  %v630 = vld [vmem:[#allocation2 + $0xf0] sm:$0xff]
  %v631 = vld [vmem:[#allocation2 + $0xf8] sm:$0xff]
  %v632 = vld [vmem:[#allocation2 + $0x100] sm:$0xff]
  %v633 = vld [vmem:[#allocation2 + $0x108] sm:$0xff]
  %v634 = vld [vmem:[#allocation2 + $0x110] sm:$0xff]
  %v635 = vld [vmem:[#allocation2 + $0x118] sm:$0xff]
  %v636 = vld [vmem:[%s4] sm:$0xff]
  %638 = vset.pattern.permute.xlu0 0
  %639 = vperm.xlu0 %638, %v636
  %v640 = vpop.permute.xlu0 %639
  %v643 = vsel %vm285, %v599, 0
  %645 = vmatprep.subr.mxu0 %v601
  %646 = vmatpush1.msra.mxu0 %v600
  %647 = vmatprep.subr.mxu0 %v605
  %648 = vmatpush1.msra.mxu0 %v604
  %649 = vmatprep.subr.mxu0 %v609
  %650 = vmatpush1.msra.mxu0 %v608
  %651 = vmatprep.subr.mxu0 %v613
  %652 = vmatpush1.msra.mxu0 %v612
  %653 = vmatprep.subr.mxu0 %v617
  %654 = vmatpush1.msra.mxu0 %v616
  %655 = vmatprep.subr.mxu0 %v621
  %656 = vmatpush1.msra.mxu0 %v620
  %657 = vmatprep.subr.mxu0 %v625
  %658 = vmatpush1.msra.mxu0 %v624
  %659 = vmatprep.subr.mxu0 %v629
  %660 = vmatpush1.msra.mxu0 %v628
  %661 = vmatprep.subr.mxu0 %v633
  %662 = vmatpush1.msra.mxu0 %v632
  %663 = vmatprep.subr.mxu0 0.0
  %664 = vmatpush1.msra.mxu0 0.0
  %665 = vmatprep.subr.mxu0 0.0
  %666 = vmatpush1.msra.mxu0 0.0
  %667 = vmatprep.subr.mxu0 0.0
  %668 = vmatpush1.msra.mxu0 0.0
  %669 = vmatprep.subr.mxu0 0.0
  %670 = vmatpush1.msra.mxu0 0.0
  %671 = vmatprep.subr.mxu0 0.0
  %672 = vmatpush1.msra.mxu0 0.0
  %673 = vmatprep.subr.mxu0 0.0
  %674 = vmatpush1.msra.mxu0 0.0
  %675 = vmatprep.subr.mxu0 0.0
  %676 = vmatpush1.msra.mxu0 0.0
  %677 = vmatprep.subr.mxu0 0.0
  %678 = vmatpush1.msra.mxu0 0.0
  %679 = vmatprep.subr.mxu0 0.0
  %680 = vmatpush1.msra.mxu0 0.0
  %681 = vmatprep.subr.mxu0 0.0
  %682 = vmatpush1.msra.mxu0 0.0
  %683 = vmatprep.subr.mxu0 0.0
  %684 = vmatpush1.msra.mxu0 0.0
  %685 = vmatprep.subr.mxu0 0.0
  %686 = vmatpush1.msra.mxu0 0.0
  %687 = vmatprep.subr.mxu0 0.0
  %688 = vmatpush1.msra.mxu0 0.0
  %689 = vmatprep.subr.mxu0 0.0
  %690 = vmatpush1.msra.mxu0 0.0
  %691 = vmatprep.subr.mxu0 0.0
  %692 = vmatpush1.msra.mxu0 0.0
  %693 = vmatprep.subr.mxu0 0.0
  %694 = vmatpush1.msra.mxu0 0.0
  %695 = vmatprep.subr.mxu0 0.0
  %696 = vmatpush1.msra.mxu0 0.0
  %697 = vmatprep.subr.mxu0 0.0
  %698 = vmatpush1.msra.mxu0 0.0
  %699 = vmatprep.subr.mxu0 0.0
  %700 = vmatpush1.msra.mxu0 0.0
  %701 = vmatprep.subr.mxu0 0.0
  %702 = vmatpush1.msra.mxu0 0.0
  %703 = vmatprep.subr.mxu0 0.0
  %704 = vmatpush1.msra.mxu0 0.0
  %705 = vmatprep.subr.mxu0 0.0
  %706 = vmatpush1.msra.mxu0 0.0
  %707 = vmatprep.subr.mxu0 0.0
  %708 = vmatpush1.msra.mxu0 0.0
  %709 = vmatprep.mubr.f32.mxu0 0.0
  %710 = vmatmul.mubr.f32.gmra.mrb[0].mxu0 %v643
  %v711 = vpop.f32.mrb[0].mxu0
  %v712 = vadd.f32 %v640, %v711
  %v713 = vpop.f32.mrb[0].mxu0
  %v714 = vadd.f32 %v640, %v713
  %715 = vdwg.mxu0
  %716 = vmatprep.subr.mxu0 %v603
  %717 = vmatpush1.msra.mxu0 %v602
  %718 = vmatprep.subr.mxu0 %v607
  %719 = vmatpush1.msra.mxu0 %v606
  %720 = vmatprep.subr.mxu0 %v611
  %721 = vmatpush1.msra.mxu0 %v610
  %722 = vmatprep.subr.mxu0 %v615
  %723 = vmatpush1.msra.mxu0 %v614
  %724 = vmatprep.subr.mxu0 %v619
  %725 = vmatpush1.msra.mxu0 %v618
  %726 = vmatprep.subr.mxu0 %v623
  %727 = vmatpush1.msra.mxu0 %v622
  %728 = vmatprep.subr.mxu0 %v627
  %729 = vmatpush1.msra.mxu0 %v626
  %730 = vmatprep.subr.mxu0 %v631
  %731 = vmatpush1.msra.mxu0 %v630
  %732 = vmatprep.subr.mxu0 %v635
  %733 = vmatpush1.msra.mxu0 %v634
  %734 = vmatprep.subr.mxu0 0.0
  %735 = vmatpush1.msra.mxu0 0.0
  %736 = vmatprep.subr.mxu0 0.0
  %737 = vmatpush1.msra.mxu0 0.0
  %738 = vmatprep.subr.mxu0 0.0
  %739 = vmatpush1.msra.mxu0 0.0
  %740 = vmatprep.subr.mxu0 0.0
  %741 = vmatpush1.msra.mxu0 0.0
  %742 = vmatprep.subr.mxu0 0.0
  %743 = vmatpush1.msra.mxu0 0.0
  %744 = vmatprep.subr.mxu0 0.0
  %745 = vmatpush1.msra.mxu0 0.0
  %746 = vmatprep.subr.mxu0 0.0
  %747 = vmatpush1.msra.mxu0 0.0
  %748 = vmatprep.subr.mxu0 0.0
  %749 = vmatpush1.msra.mxu0 0.0
  %750 = vmatprep.subr.mxu0 0.0
  %751 = vmatpush1.msra.mxu0 0.0
  %752 = vmatprep.subr.mxu0 0.0
  %753 = vmatpush1.msra.mxu0 0.0
  %754 = vmatprep.subr.mxu0 0.0
  %755 = vmatpush1.msra.mxu0 0.0
  %756 = vmatprep.subr.mxu0 0.0
  %757 = vmatpush1.msra.mxu0 0.0
  %758 = vmatprep.subr.mxu0 0.0
  %759 = vmatpush1.msra.mxu0 0.0
  %760 = vmatprep.subr.mxu0 0.0
  %761 = vmatpush1.msra.mxu0 0.0
  %762 = vmatprep.subr.mxu0 0.0
  %763 = vmatpush1.msra.mxu0 0.0
  %764 = vmatprep.subr.mxu0 0.0
  %765 = vmatpush1.msra.mxu0 0.0
  %766 = vmatprep.subr.mxu0 0.0
  %767 = vmatpush1.msra.mxu0 0.0
  %768 = vmatprep.subr.mxu0 0.0
  %769 = vmatpush1.msra.mxu0 0.0
  %770 = vmatprep.subr.mxu0 0.0
  %771 = vmatpush1.msra.mxu0 0.0
  %772 = vmatprep.subr.mxu0 0.0
  %773 = vmatpush1.msra.mxu0 0.0
  %774 = vmatprep.subr.mxu0 0.0
  %775 = vmatpush1.msra.mxu0 0.0
  %776 = vmatprep.subr.mxu0 0.0
  %777 = vmatpush1.msra.mxu0 0.0
  %778 = vmatprep.subr.mxu0 0.0
  %779 = vmatpush1.msra.mxu0 0.0
  %780 = vmatprep.mubr.f32.mxu0 0.0
  %781 = vmatmul.mubr.f32.gmra.mrb[0].mxu0 %v643
  %v782 = vpop.f32.mrb[0].mxu0
  %v783 = vadd.f32 %v640, %v782
  %v784 = vpop.f32.mrb[0].mxu0
  %v785 = vadd.f32 %v640, %v784
  %786 = vdwg.mxu0
  %v787 = vadd.f32 %v712, %v20
  %v788 = vadd.f32 %v714, %v21
  %v789 = vadd.f32 %v783, %v23
  %v790 = vadd.f32 %v785, %v24
  %v791 = vmax.f32 %v787, 0.0
  %v792 = vmax.f32 %v788, 0.0
  %v793 = vmax.f32 %v789, 0.0
  %v794 = vmax.f32 %v790, 0.0
  %795 = vst [vmem:[%s5] sm:$0xff] %v791
  %796 = vst [vmem:[%s5 + $0x8] sm:$0xff] %v792
  %s797 = scalar_lea.vmem %s5, 16
  %798 = vst [vmem:[%s797] sm:$0xff] %v793
  %799 = vst [vmem:[%s797 + $0x8] sm:$0xff] %v794
  // Predicated region
  $region22: #{resnet_block.1} parent=0 // pred_check
    _
  $region23: #{resnet_block.1} parent=0 // pred_check_branch
    %801 = sbr.rel (0) target = $region25
  $region24: #{resnet_block.1} parent=0 // pred_region
    _
  $region25: #{resnet_block.1} parent=0 // pred_fallthru
    _
  // Predicated region
  $region26: #{resnet_block.1} parent=0 // pred_check
    _
  $region27: #{resnet_block.1} parent=0 // pred_check_branch
    %803 = sbr.rel (0) target = $region29
  $region28: #{resnet_block.1} parent=0 // pred_region
    _
  $region29: #{resnet_block.1} parent=0 // pred_fallthru
    _

</llo_original>
